<compile_context>
chip_gen: v7x
topology: tpu7x:2x2x1
jax: 0.10.0
libtpu: 0.0.40
codegen_flags: <defaults>
</compile_context>

<pallas_src>
import math

import jax
import jax.numpy as jnp
from jax import lax
from jax.experimental import pallas as pl
from jax.experimental.pallas import tpu as pltpu


# Contract the LAST dim of both operands: x(m,k) . W(n,k) -> (m,n), i.e.
# x @ W^T without materializing W^T.
_CONTRACT_LAST = (((1,), (1,)), ((), ()))


def _round_up(x, m):
    return ((x + m - 1) // m) * m


def _vmem_budget_bytes():
    """Generation-aware VMEM budget (~75% of per-core capacity)."""
    cap = None
    try:
        cap = int(pltpu.get_tpu_info().vmem_capacity_bytes)
    except Exception:
        cap = None
    if not cap or cap <= 0:
        cap = 64 * 1024 * 1024            # conservative (v7x-safe) fallback
    budget = int(cap * 0.75)
    return max(32 * 1024 * 1024, min(budget, 112 * 1024 * 1024))


def _vmem_bytes(tm, tn, tk, rank, esize, out_esize):
    """Pipeline VMEM footprint estimate (default double buffering)."""
    rank_l = _round_up(rank, 128)          # lane padding of the rank axis
    x_b = 2 * tm * tk * esize              # streamed activation block
    w_b = 2 * tn * tk * esize              # streamed W block
    xa_b = 2 * tm * rank_l * 4             # LoRA down-projection (f32)
    b_b = 2 * tn * rank_l * 4              # LoRA up-projection weights (f32)
    bias_b = 2 * 8 * tn * 4                # bias row (sublane-padded)
    o_b = 2 * tm * tn * out_esize          # output block
    acc_b = tm * tn * 4                    # f32 accumulator scratch
    return x_b + w_b + xa_b + b_b + bias_b + o_b + acc_b


def _pick_tiles(M, N, K, rank, esize, out_esize, row_align, budget):
    big_vmem = budget >= 80 * 1024 * 1024          # v5e / v6e (128 MiB VMEM)
    tm = max(row_align, min(512, _round_up(M, row_align)))
    tn = max(128, min(1024 if big_vmem else 512, _round_up(N, 128)))
    tk = K

    def fits(a, b, c):
        return _vmem_bytes(a, b, c, rank, esize, out_esize) <= budget

    # Shrink the contraction tile first: it adds a K grid axis (accumulator)
    # but does not increase streamed HBM traffic.
    while not fits(tm, tn, tk) and tk > 512:
        tk = max(512, _round_up((tk + 1) // 2, 128))
    # Then shrink tn, then tm, then tk further as a last resort.
    while not fits(tm, tn, tk) and tn > 128:
        tn = max(128, _round_up(tn // 2, 128))
    while not fits(tm, tn, tk) and tm > row_align:
        tm = max(row_align, (tm // 2) // row_align * row_align)
    while not fits(tm, tn, tk) and tk > 128:
        tk = max(128, _round_up((tk + 1) // 2, 128))
    return tm, tn, tk


def _lora_kernel(x_ref, w_ref, bias_ref, xa_ref, b_ref, o_ref):
    """Single-K-step kernel: out = x @ W^T + xa @ B^T + bias."""
    acc = lax.dot_general(x_ref[...], w_ref[...], _CONTRACT_LAST,
                          preferred_element_type=jnp.float32)
    acc += lax.dot_general(xa_ref[...], b_ref[...], _CONTRACT_LAST,
                           preferred_element_type=jnp.float32)
    o_ref[...] = (acc + bias_ref[...]).astype(o_ref.dtype)


def _lora_kernel_ktiled(x_ref, w_ref, bias_ref, xa_ref, b_ref, o_ref, acc_ref):
    """K-tiled kernel: f32 VMEM accumulator, LoRA/bias fused into epilogue."""
    k = pl.program_id(2)

    @pl.when(k == 0)
    def _():
        acc_ref[...] = jnp.zeros_like(acc_ref)

    acc_ref[...] += lax.dot_general(x_ref[...], w_ref[...], _CONTRACT_LAST,
                                    preferred_element_type=jnp.float32)

    @pl.when(k == pl.num_programs(2) - 1)
    def _():
        lora = lax.dot_general(xa_ref[...], b_ref[...], _CONTRACT_LAST,
                               preferred_element_type=jnp.float32)
        o_ref[...] = (acc_ref[...] + lora + bias_ref[...]).astype(o_ref.dtype)


def lora_forward(x, W, bias, A, B, alpha, rank, *, compute_dtype=None,
                 tm=None, tn=None, tk=None):
    """x: [..., in_features] -> [..., out_features] (LoRA-augmented linear)."""
    out_features, in_features = W.shape
    assert A.shape == (rank, in_features)
    assert B.shape == (out_features, rank)

    out_dtype = x.dtype
    lead_shape = x.shape[:-1]
    x2d = x.reshape(-1, in_features)
    M = x2d.shape[0]

    cdt = jnp.dtype(compute_dtype) if compute_dtype is not None else x2d.dtype
    esize = cdt.itemsize
    out_esize = jnp.dtype(out_dtype).itemsize
    row_align = 8 if esize >= 4 else (16 if esize == 2 else 32)

    budget = _vmem_budget_bytes()
    a_tm, a_tn, a_tk = _pick_tiles(M, out_features, in_features, rank,
                                   esize, out_esize, row_align, budget)
    tm = a_tm if tm is None else tm
    tn = a_tn if tn is None else tn
    tk = a_tk if tk is None else tk

    scale = float(alpha) / float(rank)

    # LoRA down-projection hoisted out of the kernel: one tiny [M, rank] GEMM
    # (f32, HIGHEST precision) instead of one per output-column tile.
    xa = scale * lax.dot_general(
        x2d.astype(jnp.float32), A.astype(jnp.float32), _CONTRACT_LAST,
        preferred_element_type=jnp.float32, precision=lax.Precision.HIGHEST)

    # Streamed GEMM operands in the compute dtype; no transposes materialized.
    # TODO(synk): in a real layer, cast/pad the frozen W/B/bias once at init
    #             instead of on every forward call.
    x_c = x2d.astype(cdt)
    W_c = W.astype(cdt)                       # (out, in), consumed as (tn, tk)
    B_f32 = B.astype(jnp.float32)             # (out, rank), consumed as (tn, rank)
    bias_f32 = bias.astype(jnp.float32).reshape(1, out_features)

    M_pad = _round_up(max(M, tm), tm)
    N_pad = _round_up(max(out_features, tn), tn)
    K_pad = _round_up(max(in_features, tk), tk)

    if M_pad != M:
        x_c = jnp.pad(x_c, ((0, M_pad - M), (0, 0)))
        xa = jnp.pad(xa, ((0, M_pad - M), (0, 0)))
    if K_pad != in_features:
        pk = K_pad - in_features
        x_c = jnp.pad(x_c, ((0, 0), (0, pk)))
        W_c = jnp.pad(W_c, ((0, 0), (0, pk)))
    if N_pad != out_features:
        pn = N_pad - out_features
        W_c = jnp.pad(W_c, ((0, pn), (0, 0)))
        B_f32 = jnp.pad(B_f32, ((0, pn), (0, 0)))
        bias_f32 = jnp.pad(bias_f32, ((0, 0), (0, pn)))

    num_m = M_pad // tm
    num_n = N_pad // tn
    num_k = K_pad // tk

    # Grid ordering: keep a splittable (extent >= 2) leading parallel axis for
    # megacore, and keep the operand whose re-streaming is most expensive
    # resident across the inner sweep (streamed HBM ~ M*N*K / t_resident).
    if num_n == 1 and num_m > 1:
        m_outer = True
    elif num_m == 1 and num_n > 1:
        m_outer = False
    else:
        m_outer = tm >= tn

    if m_outer:
        grid = (num_m, num_n, num_k)
        x_map = lambda i, j, k: (i, k)
        w_map = lambda i, j, k: (j, k)
        bias_map = lambda i, j, k: (0, j)
        xa_map = lambda i, j, k: (i, 0)
        b_map = lambda i, j, k: (j, 0)
        o_map = lambda i, j, k: (i, j)
    else:
        grid = (num_n, num_m, num_k)
        x_map = lambda j, i, k: (i, k)
        w_map = lambda j, i, k: (j, k)
        bias_map = lambda j, i, k: (0, j)
        xa_map = lambda j, i, k: (i, 0)
        b_map = lambda j, i, k: (j, 0)
        o_map = lambda j, i, k: (i, j)

    in_specs = [
        pl.BlockSpec((tm, tk), x_map),        # x block
        pl.BlockSpec((tn, tk), w_map),        # W block (contracted on last dim)
        pl.BlockSpec((1, tn), bias_map),      # bias row
        pl.BlockSpec((tm, rank), xa_map),     # scaled LoRA down-projection
        pl.BlockSpec((tn, rank), b_map),      # B block (contracted on last dim)
    ]
    out_spec = pl.BlockSpec((tm, tn), o_map)

    if num_k == 1:
        kernel = _lora_kernel
        scratch = []
    else:
        kernel = _lora_kernel_ktiled
        scratch = [pltpu.VMEM((tm, tn), jnp.float32)]

    out2d = pl.pallas_call(
        kernel,
        out_shape=jax.ShapeDtypeStruct((M_pad, N_pad), out_dtype),
        grid_spec=pltpu.PrefetchScalarGridSpec(
            num_scalar_prefetch=0,
            grid=grid,
            in_specs=in_specs,
            out_specs=out_spec,
            scratch_shapes=scratch),
        compiler_params=pltpu.CompilerParams(
            dimension_semantics=("parallel", "parallel", "arbitrary"),
            vmem_limit_bytes=int(budget)),
    )(x_c, W_c, bias_f32, xa, B_f32)

    out2d = out2d[:M, :out_features]
    return out2d.reshape(*lead_shape, out_features)


if __name__ == "__main__":
    key = jax.random.PRNGKey(0)
    k_x, k_w, k_b, k_a, k_lb = jax.random.split(key, 5)

    # Small demo shapes matching the module (nn.Linear style, feature-last).
    batch, seq = 2, 8
    in_features, out_features = 32, 64
    rank, alpha = 8, 16.0

    x = jax.random.normal(k_x, (batch, seq, in_features), dtype=jnp.float32)
    W = jax.random.normal(k_w, (out_features, in_features), dtype=jnp.float32) * 0.05
    bias = jax.random.normal(k_b, (out_features,), dtype=jnp.float32) * 0.01
    # lora_A: kaiming_uniform_ bound = sqrt(6 / fan_in).  lora_B is zeros at
    # init in the module; use a small non-zero B so the LoRA path is exercised.
    bound = math.sqrt(6.0 / in_features)
    A = jax.random.uniform(k_a, (rank, in_features), dtype=jnp.float32,
                           minval=-bound, maxval=bound)
    B = jax.random.normal(k_lb, (out_features, rank), dtype=jnp.float32) * 0.02

    hi = jax.lax.Precision.HIGHEST

    def reference(x_, W_, b_, A_, B_, alpha_, rank_):
        orig = jnp.matmul(x_, W_.T, precision=hi) + b_
        lora = jnp.matmul(jnp.matmul(x_, A_.T, precision=hi), B_.T, precision=hi)
        return orig + (alpha_ / rank_) * lora

    ref = reference(x, W, bias, A, B, alpha, rank)

    # f32 compute path.
    out_f32 = jax.block_until_ready(lora_forward(x, W, bias, A, B, alpha, rank))
    assert out_f32.shape == (batch, seq, out_features)
    assert jnp.allclose(out_f32, ref, atol=1e-4, rtol=1e-4), "f32 mismatch"

    # bf16 streamed operands (MXU-native on v6e/v7x); f32 LoRA path / epilogue.
    out_bf16 = jax.block_until_ready(
        lora_forward(x, W, bias, A, B, alpha, rank, compute_dtype=jnp.bfloat16))
    assert out_bf16.dtype == x.dtype
    assert jnp.allclose(out_bf16, ref, atol=5e-2, rtol=5e-2), "bf16 mismatch"

    # Larger shapes: exercises M/N zero-padding (300 rows -> 304, out 320 -> 384).
    bm, bs, bin_, bout, brank = 3, 100, 96, 320, 16
    k1, k2, k3, k4, k5 = jax.random.split(jax.random.PRNGKey(1), 5)
    x2 = jax.random.normal(k1, (bm, bs, bin_), dtype=jnp.float32)
    W2 = jax.random.normal(k2, (bout, bin_), dtype=jnp.float32) * 0.05
    b2 = jax.random.normal(k3, (bout,), dtype=jnp.float32) * 0.01
    bnd = math.sqrt(6.0 / bin_)
    A2 = jax.random.uniform(k4, (brank, bin_), dtype=jnp.float32,
                            minval=-bnd, maxval=bnd)
    B2 = jax.random.normal(k5, (bout, brank), dtype=jnp.float32) * 0.02

    out2 = jax.block_until_ready(lora_forward(x2, W2, b2, A2, B2, alpha, brank))
    ref2 = reference(x2, W2, b2, A2, B2, alpha, brank)
    assert out2.shape == (bm, bs, bout)
    assert jnp.allclose(out2, ref2, atol=2e-3, rtol=2e-3), "multi-tile mismatch"

    # K-tiled accumulator path (forced small tiles so num_k > 1 and the grid
    # has multiple M / N tiles).
    cm, cs, cin, cout, crank = 2, 64, 384, 256, 8
    q1, q2, q3, q4, q5 = jax.random.split(jax.random.PRNGKey(2), 5)
    x3 = jax.random.normal(q1, (cm, cs, cin), dtype=jnp.float32)
    W3 = jax.random.normal(q2, (cout, cin), dtype=jnp.float32) * 0.05
    b3 = jax.random.normal(q3, (cout,), dtype=jnp.float32) * 0.01
    bnd3 = math.sqrt(6.0 / cin)
    A3 = jax.random.uniform(q4, (crank, cin), dtype=jnp.float32,
                            minval=-bnd3, maxval=bnd3)
    B3 = jax.random.normal(q5, (cout, crank), dtype=jnp.float32) * 0.02

    out3 = jax.block_until_ready(
        lora_forward(x3, W3, b3, A3, B3, alpha, crank, tm=64, tn=128, tk=128))
    ref3 = reference(x3, W3, b3, A3, B3, alpha, crank)
    assert out3.shape == (cm, cs, cout)
    assert jnp.allclose(out3, ref3, atol=2e-3, rtol=2e-3), "k-tiled mismatch"

    print("KERNEL_OK")
</pallas_src>

<mosaic_0001>
module attributes {stable_mosaic.version = 11 : i64} {
  func.func @_lora_kernel(%arg0: i32, %arg1: i32, %arg2: i32, %arg3: memref<16x32xf32, #tpu.memory_space<vmem>>, %arg4: memref<128x32xf32, #tpu.memory_space<vmem>>, %arg5: memref<1x128xf32, #tpu.memory_space<vmem>>, %arg6: memref<16x8xf32, #tpu.memory_space<vmem>>, %arg7: memref<128x8xf32, #tpu.memory_space<vmem>>, %arg8: memref<16x128xf32, #tpu.memory_space<vmem>>) attributes {dimension_semantics = [#tpu.dimension_semantics<parallel>, #tpu.dimension_semantics<parallel>, #tpu.dimension_semantics<arbitrary>], iteration_bounds = array<i64: 1, 1, 1>, scalar_prefetch = 0 : i64, scratch_operands = 0 : i64, tpu.core_type = #tpu.core_type<tc>, window_params = [{transform_indices = @transform_0, window_bounds = array<i64: 16, 32>}, {transform_indices = @transform_1, window_bounds = array<i64: 128, 32>}, {transform_indices = @transform_2, window_bounds = array<i64: 1, 128>}, {transform_indices = @transform_3, window_bounds = array<i64: 16, 8>}, {transform_indices = @transform_4, window_bounds = array<i64: 128, 8>}, {transform_indices = @transform_5, window_bounds = array<i64: 16, 128>}]} {
    %c0 = arith.constant 0 : index
    %c0_0 = arith.constant 0 : index
    %0 = vector.load %arg3[%c0, %c0_0] : memref<16x32xf32, #tpu.memory_space<vmem>>, vector<16x32xf32>
    %c0_1 = arith.constant 0 : index
    %c0_2 = arith.constant 0 : index
    %1 = vector.load %arg4[%c0_1, %c0_2] : memref<128x32xf32, #tpu.memory_space<vmem>>, vector<128x32xf32>
    %cst = arith.constant dense<0.000000e+00> : vector<16x128xf32>
    %2 = tpu.matmul %0, %1, %cst {dimension_numbers = #tpu.dot_dimension_numbers<[1], [1], [0], [0], [0, 0, 1, 0], [], []>} : vector<16x32xf32>, vector<128x32xf32>, vector<16x128xf32> -> vector<16x128xf32>
    %c0_3 = arith.constant 0 : index
    %c0_4 = arith.constant 0 : index
    %3 = vector.load %arg6[%c0_3, %c0_4] : memref<16x8xf32, #tpu.memory_space<vmem>>, vector<16x8xf32>
    %c0_5 = arith.constant 0 : index
    %c0_6 = arith.constant 0 : index
    %4 = vector.load %arg7[%c0_5, %c0_6] : memref<128x8xf32, #tpu.memory_space<vmem>>, vector<128x8xf32>
    %cst_7 = arith.constant dense<0.000000e+00> : vector<16x128xf32>
    %5 = tpu.matmul %3, %4, %cst_7 {dimension_numbers = #tpu.dot_dimension_numbers<[1], [1], [0], [0], [0, 0, 1, 0], [], []>} : vector<16x8xf32>, vector<128x8xf32>, vector<16x128xf32> -> vector<16x128xf32>
    %6 = arith.addf %2, %5 : vector<16x128xf32>
    %c0_8 = arith.constant 0 : index
    %c0_9 = arith.constant 0 : index
    %7 = vector.load %arg5[%c0_8, %c0_9] : memref<1x128xf32, #tpu.memory_space<vmem>>, vector<1x128xf32>
    %8 = vector.broadcast %7 : vector<1x128xf32> to vector<16x128xf32>
    %9 = arith.addf %6, %8 : vector<16x128xf32>
    %c0_10 = arith.constant 0 : index
    %c0_11 = arith.constant 0 : index
    %10 = vector.load %arg8[%c0_10, %c0_11] : memref<16x128xf32, #tpu.memory_space<vmem>>, vector<16x128xf32>
    tpu.vector_store %arg8[%c0_10, %c0_11], %9 {strides = array<i32>} : memref<16x128xf32, #tpu.memory_space<vmem>>, vector<16x128xf32>,
    return
  }
  func.func @transform_0(%arg0: i32, %arg1: i32, %arg2: i32) -> (i32, i32) {
    %c0_i32 = arith.constant 0 : i32
    return %arg1, %arg2 : i32, i32
  }
  func.func @transform_1(%arg0: i32, %arg1: i32, %arg2: i32) -> (i32, i32) {
    %c0_i32 = arith.constant 0 : i32
    return %arg0, %arg2 : i32, i32
  }
  func.func @transform_2(%arg0: i32, %arg1: i32, %arg2: i32) -> (i32, i32) {
    %c0_i32 = arith.constant 0 : i32
    %c0_i32_0 = arith.constant 0 : i32
    return %c0_i32, %arg0 : i32, i32
  }
  func.func @transform_3(%arg0: i32, %arg1: i32, %arg2: i32) -> (i32, i32) {
    %c0_i32 = arith.constant 0 : i32
    %c0_i32_0 = arith.constant 0 : i32
    return %arg1, %c0_i32 : i32, i32
  }
  func.func @transform_4(%arg0: i32, %arg1: i32, %arg2: i32) -> (i32, i32) {
    %c0_i32 = arith.constant 0 : i32
    %c0_i32_0 = arith.constant 0 : i32
    return %arg0, %c0_i32 : i32, i32
  }
  func.func @transform_5(%arg0: i32, %arg1: i32, %arg2: i32) -> (i32, i32) {
    %c0_i32 = arith.constant 0 : i32
    return %arg1, %arg0 : i32, i32
  }
}

</mosaic_0001>

<llo_original>
// kernel: tpu_custom_call.1
$region0: #{tpu_custom_call.1}
  #allocation0 [shape = 'u32[]', space=smem, size = 0x4, offset = 0x4, fixed_abs, tag = 'smem constant byte address 0x4 - core index']
  #allocation1 [shape = 'u32[144,128]{1,0:T(1,128)}', space=vmem, size = 0x12000, scoped, tag = 'internal scratch']
  %s0 = inlined_call_operand.vmem [shape: f32[16,32], index: 0, kind: input, shape index: {}]
  %s1 = inlined_call_operand.vmem [shape: f32[128,32], index: 1, kind: input, shape index: {}]
  %s2 = inlined_call_operand.vmem [shape: f32[1,128], index: 2, kind: input, shape index: {}]
  %s3 = inlined_call_operand.vmem [shape: f32[16,8], index: 3, kind: input, shape index: {}]
  %s4 = inlined_call_operand.vmem [shape: f32[128,8], index: 4, kind: input, shape index: {}]
  %s5 = inlined_call_operand.hbm [shape: f32[16,128], index: 5, kind: output, shape index: {}]
  %s6 = sld [smem:[#allocation0]]
  $region30: #{tpu_custom_call.1} parent=0
    _
  %s8 = ssub.s32 1, %s6
  %s9 = scalar_select 0, %s8, %s6
  $region1: #{tpu_custom_call.1} parent=0
    #allocation2 [shape = 'u8[8192]{0}', space=vmem, size = 0x2000, scoped, tag = 'output window, operand 0, single buffered']
    #allocation3 [shape = 's32[1]{0}', space=sflag, size = 0x4, scoped, tag = 'scoped memory for tpu_custom_call.1']
    %10 = vsyncpa [#allocation3], 0
    // Predicated region
    $region2: #{tpu_custom_call.1} parent=1 // pred_check
      _
    $region3: #{tpu_custom_call.1} parent=1 // pred_check_branch
      %12 = sbr.rel (0) target = $region5
    $region4: #{tpu_custom_call.1} parent=1 // pred_region
      _
    $region5: #{tpu_custom_call.1} parent=1 // pred_fallthru
      _
    // Predicated region
    $region6: #{tpu_custom_call.1} parent=1 // pred_check
      _
    $region7: #{tpu_custom_call.1} parent=1 // pred_check_branch
      %14 = sbr.rel (0) target = $region9
    $region8: #{tpu_custom_call.1} parent=1 // pred_region
      _
    $region9: #{tpu_custom_call.1} parent=1 // pred_fallthru
      _
    // Predicated region
    $region10: #{tpu_custom_call.1} parent=1 // pred_check
      _
    $region11: #{tpu_custom_call.1} parent=1 // pred_check_branch
      %16 = sbr.rel (0) target = $region13
    $region12: #{tpu_custom_call.1} parent=1 // pred_region
      _
    $region13: #{tpu_custom_call.1} parent=1 // pred_fallthru
      _
    // Predicated region
    $region14: #{tpu_custom_call.1} parent=1 // pred_check
      _
    $region15: #{tpu_custom_call.1} parent=1 // pred_check_branch
      %18 = sbr.rel (0) target = $region17
    $region16: #{tpu_custom_call.1} parent=1 // pred_region
      _
    $region17: #{tpu_custom_call.1} parent=1 // pred_fallthru
      _
    // Predicated region
    $region18: #{tpu_custom_call.1} parent=1 // pred_check
      _
    $region19: #{tpu_custom_call.1} parent=1 // pred_check_branch
      %20 = sbr.rel (0) target = $region21
    $region20: #{tpu_custom_call.1} parent=1 // pred_region
      _
    $region21: #{tpu_custom_call.1} parent=1 // pred_fallthru
      _
    %v21 = vld [vmem:[%s0] sm:$0xff]
    %v22 = vld [vmem:[%s0 + $0x8] sm:$0xff]
    %v23 = vld [vmem:[%s1] sm:$0xff]
    %v24 = vld [vmem:[%s1 + $0x8] sm:$0xff]
    %v25 = vld [vmem:[%s1 + $0x10] sm:$0xff]
    %v26 = vld [vmem:[%s1 + $0x18] sm:$0xff]
    %v27 = vld [vmem:[%s1 + $0x20] sm:$0xff]
    %v28 = vld [vmem:[%s1 + $0x28] sm:$0xff]
    %v29 = vld [vmem:[%s1 + $0x30] sm:$0xff]
    %v30 = vld [vmem:[%s1 + $0x38] sm:$0xff]
    %v31 = vld [vmem:[%s1 + $0x40] sm:$0xff]
    %v32 = vld [vmem:[%s1 + $0x48] sm:$0xff]
    %v33 = vld [vmem:[%s1 + $0x50] sm:$0xff]
    %v34 = vld [vmem:[%s1 + $0x58] sm:$0xff]
    %v35 = vld [vmem:[%s1 + $0x60] sm:$0xff]
    %v36 = vld [vmem:[%s1 + $0x68] sm:$0xff]
    %v37 = vld [vmem:[%s1 + $0x70] sm:$0xff]
    %v38 = vld [vmem:[%s1 + $0x78] sm:$0xff]
    %v39 = vld [vmem:[%s3] sm:$0xff]
    %v40 = vld [vmem:[%s3 + $0x8] sm:$0xff]
    %v41 = vld [vmem:[%s4] sm:$0xff]
    %v42 = vld [vmem:[%s4 + $0x8] sm:$0xff]
    %v43 = vld [vmem:[%s4 + $0x10] sm:$0xff]
    %v44 = vld [vmem:[%s4 + $0x18] sm:$0xff]
    %v45 = vld [vmem:[%s4 + $0x20] sm:$0xff]
    %v46 = vld [vmem:[%s4 + $0x28] sm:$0xff]
    %v47 = vld [vmem:[%s4 + $0x30] sm:$0xff]
    %v48 = vld [vmem:[%s4 + $0x38] sm:$0xff]
    %v49 = vld [vmem:[%s4 + $0x40] sm:$0xff]
    %v50 = vld [vmem:[%s4 + $0x48] sm:$0xff]
    %v51 = vld [vmem:[%s4 + $0x50] sm:$0xff]
    %v52 = vld [vmem:[%s4 + $0x58] sm:$0xff]
    %v53 = vld [vmem:[%s4 + $0x60] sm:$0xff]
    %v54 = vld [vmem:[%s4 + $0x68] sm:$0xff]
    %v55 = vld [vmem:[%s4 + $0x70] sm:$0xff]
    %v56 = vld [vmem:[%s4 + $0x78] sm:$0xff]
    %vm57 = vcmask 64512
    %v59 = vsel %vm57, %v39, 0
    %v62 = vsel %vm57, %v40, 0
    %v65 = vsel %vm57, %v41, 0
    %v68 = vsel %vm57, %v42, 0
    %v71 = vsel %vm57, %v43, 0
    %v74 = vsel %vm57, %v44, 0
    %v77 = vsel %vm57, %v45, 0
    %v80 = vsel %vm57, %v46, 0
    %v83 = vsel %vm57, %v47, 0
    %v86 = vsel %vm57, %v48, 0
    %v89 = vsel %vm57, %v49, 0
    %v92 = vsel %vm57, %v50, 0
    %v95 = vsel %vm57, %v51, 0
    %v98 = vsel %vm57, %v52, 0
    %v101 = vsel %vm57, %v53, 0
    %v104 = vsel %vm57, %v54, 0
    %v107 = vsel %vm57, %v55, 0
    %v110 = vsel %vm57, %v56, 0
    %112 = vmatprep.subr.mxu0 0.0
    %113 = vmatpush1.xpose.msra.mxu0 %v65
    %114 = vmatprep.subr.mxu0 0.0
    %115 = vmatpush1.xpose.msra.mxu0 %v68
    %116 = vmatprep.subr.mxu0 0.0
    %117 = vmatpush1.xpose.msra.mxu0 %v71
    %118 = vmatprep.subr.mxu0 0.0
    %119 = vmatpush1.xpose.msra.mxu0 %v74
    %120 = vmatprep.subr.mxu0 0.0
    %121 = vmatpush1.xpose.msra.mxu0 %v77
    %122 = vmatprep.subr.mxu0 0.0
    %123 = vmatpush1.xpose.msra.mxu0 %v80
    %124 = vmatprep.subr.mxu0 0.0
    %125 = vmatpush1.xpose.msra.mxu0 %v83
    %126 = vmatprep.subr.mxu0 0.0
    %127 = vmatpush1.xpose.msra.mxu0 %v86
    %128 = vmatprep.subr.mxu0 0.0
    %129 = vmatpush1.xpose.msra.mxu0 %v89
    %130 = vmatprep.subr.mxu0 0.0
    %131 = vmatpush1.xpose.msra.mxu0 %v92
    %132 = vmatprep.subr.mxu0 0.0
    %133 = vmatpush1.xpose.msra.mxu0 %v95
    %134 = vmatprep.subr.mxu0 0.0
    %135 = vmatpush1.xpose.msra.mxu0 %v98
    %136 = vmatprep.subr.mxu0 0.0
    %137 = vmatpush1.xpose.msra.mxu0 %v101
    %138 = vmatprep.subr.mxu0 0.0
    %139 = vmatpush1.xpose.msra.mxu0 %v104
    %140 = vmatprep.subr.mxu0 0.0
    %141 = vmatpush1.xpose.msra.mxu0 %v107
    %142 = vmatprep.subr.mxu0 0.0
    %143 = vmatpush1.xpose.msra.mxu0 %v110
    %144 = vmatprep.subr.mxu0 0.0
    %145 = vmatpush1.xpose.msra.mxu0 0.0
    %146 = vmatprep.subr.mxu0 0.0
    %147 = vmatpush1.xpose.msra.mxu0 0.0
    %148 = vmatprep.subr.mxu0 0.0
    %149 = vmatpush1.xpose.msra.mxu0 0.0
    %150 = vmatprep.subr.mxu0 0.0
    %151 = vmatpush1.xpose.msra.mxu0 0.0
    %152 = vmatprep.subr.mxu0 0.0
    %153 = vmatpush1.xpose.msra.mxu0 0.0
    %154 = vmatprep.subr.mxu0 0.0
    %155 = vmatpush1.xpose.msra.mxu0 0.0
    %156 = vmatprep.subr.mxu0 0.0
    %157 = vmatpush1.xpose.msra.mxu0 0.0
    %158 = vmatprep.subr.mxu0 0.0
    %159 = vmatpush1.xpose.msra.mxu0 0.0
    %160 = vmatprep.subr.mxu0 0.0
    %161 = vmatpush1.xpose.msra.mxu0 0.0
    %162 = vmatprep.subr.mxu0 0.0
    %163 = vmatpush1.xpose.msra.mxu0 0.0
    %164 = vmatprep.subr.mxu0 0.0
    %165 = vmatpush1.xpose.msra.mxu0 0.0
    %166 = vmatprep.subr.mxu0 0.0
    %167 = vmatpush1.xpose.msra.mxu0 0.0
    %168 = vmatprep.subr.mxu0 0.0
    %169 = vmatpush1.xpose.msra.mxu0 0.0
    %170 = vmatprep.subr.mxu0 0.0
    %171 = vmatpush1.xpose.msra.mxu0 0.0
    %172 = vmatprep.subr.mxu0 0.0
    %173 = vmatpush1.xpose.msra.mxu0 0.0
    %174 = vmatprep.subr.mxu0 0.0
    %175 = vmatpush1.xpose.msra.mxu0 0.0
    %176 = vmatprep.mubr.f32.mxu0 0.0
    %177 = vmatmul.mubr.f32.gmra.mrb[0].mxu0 %v59
    %v178 = vpop.f32.mrb[0].mxu0
    %v179 = vadd.f32 0.0, %v178
    %v180 = vpop.f32.mrb[0].mxu0
    %181 = vmatprep.mubr.f32.mxu0 0.0
    %182 = vmatmul.mubr.f32.gmra.mrb[0].mxu0 %v62
    %v183 = vpop.f32.mrb[0].mxu0
    %v184 = vadd.f32 0.0, %v183
    %v185 = vpop.f32.mrb[0].mxu0
    %186 = vdwg.mxu0
    %vm187 = vcmask 261120
    %v189 = vsel %vm187, %v21, 0
    %v192 = vsel %vm187, %v22, 0
    %v195 = vsel %vm187, %v23, 0
    %v198 = vsel %vm187, %v24, 0
    %v201 = vsel %vm187, %v25, 0
    %v204 = vsel %vm187, %v26, 0
    %v207 = vsel %vm187, %v27, 0
    %v210 = vsel %vm187, %v28, 0
    %v213 = vsel %vm187, %v29, 0
    %v216 = vsel %vm187, %v30, 0
    %v219 = vsel %vm187, %v31, 0
    %v222 = vsel %vm187, %v32, 0
    %v225 = vsel %vm187, %v33, 0
    %v228 = vsel %vm187, %v34, 0
    %v231 = vsel %vm187, %v35, 0
    %v234 = vsel %vm187, %v36, 0
    %v237 = vsel %vm187, %v37, 0
    %v240 = vsel %vm187, %v38, 0
    %242 = vmatprep.subr.mxu0 0.0
    %243 = vmatpush1.xpose.msra.mxu0 %v195
    %244 = vmatprep.subr.mxu0 0.0
    %245 = vmatpush1.xpose.msra.mxu0 %v198
    %246 = vmatprep.subr.mxu0 0.0
    %247 = vmatpush1.xpose.msra.mxu0 %v201
    %248 = vmatprep.subr.mxu0 0.0
    %249 = vmatpush1.xpose.msra.mxu0 %v204
    %250 = vmatprep.subr.mxu0 0.0
    %251 = vmatpush1.xpose.msra.mxu0 %v207
    %252 = vmatprep.subr.mxu0 0.0
    %253 = vmatpush1.xpose.msra.mxu0 %v210
    %254 = vmatprep.subr.mxu0 0.0
    %255 = vmatpush1.xpose.msra.mxu0 %v213
    %256 = vmatprep.subr.mxu0 0.0
    %257 = vmatpush1.xpose.msra.mxu0 %v216
    %258 = vmatprep.subr.mxu0 0.0
    %259 = vmatpush1.xpose.msra.mxu0 %v219
    %260 = vmatprep.subr.mxu0 0.0
    %261 = vmatpush1.xpose.msra.mxu0 %v222
    %262 = vmatprep.subr.mxu0 0.0
    %263 = vmatpush1.xpose.msra.mxu0 %v225
    %264 = vmatprep.subr.mxu0 0.0
    %265 = vmatpush1.xpose.msra.mxu0 %v228
    %266 = vmatprep.subr.mxu0 0.0
    %267 = vmatpush1.xpose.msra.mxu0 %v231
    %268 = vmatprep.subr.mxu0 0.0
    %269 = vmatpush1.xpose.msra.mxu0 %v234
    %270 = vmatprep.subr.mxu0 0.0
    %271 = vmatpush1.xpose.msra.mxu0 %v237
    %272 = vmatprep.subr.mxu0 0.0
    %273 = vmatpush1.xpose.msra.mxu0 %v240
    %274 = vmatprep.subr.mxu0 0.0
    %275 = vmatpush1.xpose.msra.mxu0 0.0
    %276 = vmatprep.subr.mxu0 0.0
    %277 = vmatpush1.xpose.msra.mxu0 0.0
    %278 = vmatprep.subr.mxu0 0.0
    %279 = vmatpush1.xpose.msra.mxu0 0.0
    %280 = vmatprep.subr.mxu0 0.0
    %281 = vmatpush1.xpose.msra.mxu0 0.0
    %282 = vmatprep.subr.mxu0 0.0
    %283 = vmatpush1.xpose.msra.mxu0 0.0
    %284 = vmatprep.subr.mxu0 0.0
    %285 = vmatpush1.xpose.msra.mxu0 0.0
    %286 = vmatprep.subr.mxu0 0.0
    %287 = vmatpush1.xpose.msra.mxu0 0.0
    %288 = vmatprep.subr.mxu0 0.0
    %289 = vmatpush1.xpose.msra.mxu0 0.0
    %290 = vmatprep.subr.mxu0 0.0
    %291 = vmatpush1.xpose.msra.mxu0 0.0
    %292 = vmatprep.subr.mxu0 0.0
    %293 = vmatpush1.xpose.msra.mxu0 0.0
    %294 = vmatprep.subr.mxu0 0.0
    %295 = vmatpush1.xpose.msra.mxu0 0.0
    %296 = vmatprep.subr.mxu0 0.0
    %297 = vmatpush1.xpose.msra.mxu0 0.0
    %298 = vmatprep.subr.mxu0 0.0
    %299 = vmatpush1.xpose.msra.mxu0 0.0
    %300 = vmatprep.subr.mxu0 0.0
    %301 = vmatpush1.xpose.msra.mxu0 0.0
    %302 = vmatprep.subr.mxu0 0.0
    %303 = vmatpush1.xpose.msra.mxu0 0.0
    %304 = vmatprep.subr.mxu0 0.0
    %305 = vmatpush1.xpose.msra.mxu0 0.0
    %306 = vmatprep.mubr.f32.mxu0 0.0
    %307 = vmatmul.mubr.f32.gmra.mrb[0].mxu0 %v189
    %v308 = vpop.f32.mrb[0].mxu0
    %v309 = vadd.f32 %v179, %v308
    %v310 = vpop.f32.mrb[0].mxu0
    %311 = vmatprep.mubr.f32.mxu0 0.0
    %312 = vmatmul.mubr.f32.gmra.mrb[0].mxu0 %v192
    %v313 = vpop.f32.mrb[0].mxu0
    %v314 = vadd.f32 %v184, %v313
    %v315 = vpop.f32.mrb[0].mxu0
    %316 = vdwg.mxu0
    %v317 = vld [vmem:[%s2] sm:$0x1]
    %v319 = vlaneseq
    %v320 = vshrl.u32 %v319, 7
    %v321 = vsub.s32 0, %v320
    %v322 = vrot.slane %v317, %v321
    %v324 = vadd.f32 %v309, %v322
    %v325 = vadd.f32 %v314, %v322
    %326 = vst [vmem:[#allocation2] sm:$0xff] %v324
    %327 = vst [vmem:[#allocation2 + $0x8] sm:$0xff] %v325
    // Predicated region
    $region22: #{tpu_custom_call.1} parent=1 // pred_check
      _
    $region23: #{tpu_custom_call.1} parent=1 // pred_check_branch
      %329 = sbr.rel (0) target = $region25
    $region24: #{tpu_custom_call.1} parent=1 // pred_region
      %s331 = ssub.s32 256, 256
      %332 = vsyncadd [#allocation3], %s331
      %s333 = sshll.u32 [#allocation2], 4
      %s334 = int_to_ptr.vmem [resolvable:$true] %s333
      %339 = dma.vmem_to_hbm [thread:$0]  %s334, 256, %s5, [#allocation3], 128, 128, 8
    $region25: #{tpu_custom_call.1} parent=1 // pred_fallthru
      _
    // Predicated region
    $region26: #{tpu_custom_call.1} parent=1 // pred_check
      _
    $region27: #{tpu_custom_call.1} parent=1 // pred_check_branch
      %341 = sbr.rel (0) target = $region29
    $region28: #{tpu_custom_call.1} parent=1 // pred_region
      %342 = dma.done [#allocation3], 256
    $region29: #{tpu_custom_call.1} parent=1 // pred_fallthru
      _
    %343 = vsyncpa [#allocation3], 1

</llo_original>
